<compile_context>
chip_gen: v6e
topology: v6e:2x2x1
jax: 0.10.0
libtpu: 0.0.40
codegen_flags: <defaults>
</compile_context>

<pallas_src>
import functools

import jax
import jax.numpy as jnp
from jax.experimental import pallas as pl
from jax.experimental.pallas import tpu as pltpu


def _round_up(n: int, m: int) -> int:
    return ((n + m - 1) // m) * m


def _round_down(n: int, m: int) -> int:
    return (n // m) * m


def _vmem_capacity_bytes() -> int:
    try:
        return int(pltpu.get_tpu_info().vmem_capacity_bytes)
    except Exception:
        return 64 * 1024 * 1024  # conservative (v7x-sized); safe on every gen


def _choose_tiling(batch: int, fd: int, itemsize: int, vmem_cap: int):
    """Pick (tile_b, chunk): tile_b = DMA block rows, chunk = in-kernel stream rows."""
    row_bytes = max(1, fd * itemsize)
    # Target large multi-MiB input buffers: ~cap/5 per buffer (>= 8 MiB), so
    # 2 double-buffered copies + streaming temps + the tiny A/output buffers
    # stay well inside scoped VMEM on v5e/v6e (128 MiB) and v7x (64 MiB).
    per_buf = max(8 * 1024 * 1024, vmem_cap // 5)
    tile = max(8, _round_down(per_buf // row_bytes, 8))
    tile = min(tile, _round_up(batch, 8))
    # v7x megacore: ensure >= 2 grid steps when the batch is big enough that
    # splitting one maximal tile into two half tiles pays off.
    if batch >= 4096 and pl.cdiv(batch, tile) < 2:
        tile = max(8, _round_up(pl.cdiv(batch, 2), 8))
    # In-kernel streaming chunk: cap the live f32 temporaries at ~2 MiB so the
    # full tile is never upcast at once (chunk never bounds the DMA block).
    chunk = max(8, _round_down((2 * 1024 * 1024) // (4 * fd), 8))
    chunk = min(chunk, 1024, tile)
    tile = max(chunk, _round_down(tile, chunk))  # tile is an exact multiple of chunk
    return tile, chunk


def fm_kernel(x_ref, a_ref, o_ref, *, chunk: int, n_chunks: int):
    # x_ref: (tile_b, F*D) native dtype; a_ref: (F*D, D) bf16 identity stack
    # (VMEM-resident, index_map is constant); o_ref: (1, n_chunks, chunk) f32.
    a = a_ref[...]  # hoisted out of the chunk loop

    def body(c, carry):
        start = pl.multiple_of(c * chunk, chunk)
        xc = x_ref[pl.ds(start, chunk), :]          # (chunk, F*D), native dtype
        xf = xc.astype(jnp.float32)
        if xc.dtype == jnp.float32:
            # Split-precision MXU field-sum: A is exact in bf16, so two bf16
            # passes reconstruct the f32 row-sum to ~2^-16 relative accuracy.
            hi = xc.astype(jnp.bfloat16)
            lo = (xc - hi.astype(jnp.float32)).astype(jnp.bfloat16)
            s = (jnp.dot(hi, a, preferred_element_type=jnp.float32)
                 + jnp.dot(lo, a, preferred_element_type=jnp.float32))
        else:
            s = jnp.dot(xc, a, preferred_element_type=jnp.float32)  # (chunk, D)
        normsq = jnp.sum(s * s, axis=-1)            # (chunk,)  ||sum_f x||^2
        sumsq = jnp.sum(xf * xf, axis=-1)           # (chunk,)  sum_f,d x^2
        inter = 0.5 * (normsq - sumsq)
        o_ref[0, c, :] = inter.astype(o_ref.dtype)  # lane-dense chunk row
        return carry

    jax.lax.fori_loop(0, n_chunks, body, None, unroll=(n_chunks <= 8))


def fm_forward(x):
    """FM 2nd-order interaction per row: 0.5 * sum_d[(sum_f x)^2 - sum_f x^2]."""
    B, F, D = x.shape
    FD = F * D
    x2d = x.reshape(B, FD)                          # contiguous lane-dense layout

    vmem_cap = _vmem_capacity_bytes()
    tile_b, chunk = _choose_tiling(B, FD, x.dtype.itemsize, vmem_cap)
    n_chunks = tile_b // chunk
    num_tiles = pl.cdiv(B, tile_b)                  # ragged last block: no jnp.pad

    # (F*D, D) stack of identity matrices: x2d @ A == sum over fields.
    a = jnp.tile(jnp.eye(D, dtype=jnp.bfloat16), (F, 1))

    kernel = functools.partial(fm_kernel, chunk=chunk, n_chunks=n_chunks)
    out = pl.pallas_call(
        kernel,
        out_shape=jax.ShapeDtypeStruct((num_tiles, n_chunks, chunk), jnp.float32),
        grid=(num_tiles,),
        in_specs=[
            pl.BlockSpec((tile_b, FD), lambda i: (i, 0)),
            pl.BlockSpec((FD, D), lambda i: (0, 0)),   # constant block, VMEM-resident
        ],
        out_specs=pl.BlockSpec((1, n_chunks, chunk), lambda i: (i, 0, 0)),
        compiler_params=pltpu.CompilerParams(
            dimension_semantics=("parallel",),          # megacore sharding on v7x
            vmem_limit_bytes=min((vmem_cap * 3) // 4, 100 * 1024 * 1024),
        ),
    )(x2d, a)
    # Rows >= B of the last (ragged) tile are computed on unspecified data and
    # dropped here; rows are independent, so this is safe.
    return out.reshape(num_tiles * tile_b, 1)[:B]


def fm_reference(x):
    xf = x.astype(jnp.float32)
    s = jnp.sum(xf, axis=1)
    sq = jnp.sum(xf * xf, axis=1)
    return 0.5 * jnp.sum(s * s - sq, axis=-1, keepdims=True)


if __name__ == "__main__":
    key = jax.random.PRNGKey(0)
    B, F, D = 8, 4, 32                              # small synthetic shapes
    x = jax.random.normal(key, (B, F, D), dtype=jnp.float32)

    out = jax.block_until_ready(fm_forward(x))

    ref = fm_reference(x)
    assert out.shape == (B, 1)
    # Split-precision MXU field-sum is accurate to ~1e-5 relative; 1e-3 is a
    # comfortable margin for the (sum^2 - sum-of-squares) cancellation.
    assert jnp.allclose(out, ref, atol=1e-3, rtol=1e-3)

    print("KERNEL_OK")
</pallas_src>

<mosaic_0001>
module attributes {stable_mosaic.version = 11 : i64} {
  func.func @fm_kernel(%arg0: i32, %arg1: memref<8x128xf32, #tpu.memory_space<vmem>>, %arg2: memref<128x32xbf16, #tpu.memory_space<vmem>>, %arg3: memref<1x1x8xf32, #tpu.memory_space<vmem>>) attributes {dimension_semantics = [#tpu.dimension_semantics<parallel>], iteration_bounds = array<i64: 1>, scalar_prefetch = 0 : i64, scratch_operands = 0 : i64, tpu.core_type = #tpu.core_type<tc>, window_params = [{transform_indices = @transform_0, window_bounds = array<i64: 8, 128>}, {pipeline_mode = #tpu.pipeline_mode<synchronous>, transform_indices = @transform_1, window_bounds = array<i64: 128, 32>}, {transform_indices = @transform_2, window_bounds = array<i64: 1, 1, 8>}]} {
    %c0 = arith.constant 0 : index
    %c0_0 = arith.constant 0 : index
    %0 = vector.load %arg2[%c0, %c0_0] : memref<128x32xbf16, #tpu.memory_space<vmem>>, vector<128x32xbf16>
    %c0_i32 = arith.constant 0 : i32
    %c8_i32 = arith.constant 8 : i32
    %1 = arith.muli %c0_i32, %c8_i32 : i32
    %2 = tpu.assume_multiple %1, 8 : i32
    %3 = arith.index_cast %2 : i32 to index
    %c0_1 = arith.constant 0 : index
    %4 = vector.load %arg1[%3, %c0_1] : memref<8x128xf32, #tpu.memory_space<vmem>>, vector<8x128xf32>
    %5 = arith.truncf %4 : vector<8x128xf32> to vector<8x128xbf16>
    %6 = arith.extf %5 : vector<8x128xbf16> to vector<8x128xf32>
    %7 = arith.subf %4, %6 : vector<8x128xf32>
    %8 = arith.truncf %7 : vector<8x128xf32> to vector<8x128xbf16>
    %cst = arith.constant dense<0.000000e+00> : vector<8x32xf32>
    %9 = tpu.matmul %5, %0, %cst {dimension_numbers = #tpu.dot_dimension_numbers<[1], [0], [0], [1], [0, 0, 1, 1], [], []>} : vector<8x128xbf16>, vector<128x32xbf16>, vector<8x32xf32> -> vector<8x32xf32>
    %cst_2 = arith.constant dense<0.000000e+00> : vector<8x32xf32>
    %10 = tpu.matmul %8, %0, %cst_2 {dimension_numbers = #tpu.dot_dimension_numbers<[1], [0], [0], [1], [0, 0, 1, 1], [], []>} : vector<8x128xbf16>, vector<128x32xbf16>, vector<8x32xf32> -> vector<8x32xf32>
    %11 = arith.addf %9, %10 : vector<8x32xf32>
    %12 = arith.mulf %11, %11 : vector<8x32xf32>
    %cst_3 = arith.constant dense<0.000000e+00> : vector<8xf32>
    %13 = vector.multi_reduction <add>, %12, %cst_3 [1] : vector<8x32xf32> to vector<8xf32>
    %14 = arith.mulf %4, %4 : vector<8x128xf32>
    %cst_4 = arith.constant dense<0.000000e+00> : vector<8xf32>
    %15 = vector.multi_reduction <add>, %14, %cst_4 [1] : vector<8x128xf32> to vector<8xf32>
    %16 = arith.subf %13, %15 : vector<8xf32>
    %cst_5 = arith.constant 5.000000e-01 : f32
    %17 = vector.broadcast %cst_5 : f32 to vector<8xf32>
    %18 = arith.mulf %17, %16 : vector<8xf32>
    %c0_6 = arith.constant 0 : index
    %19 = arith.index_cast %c0_i32 : i32 to index
    %c0_7 = arith.constant 0 : index
    %20 = vector.load %arg3[%c0_6, %19, %c0_7] : memref<1x1x8xf32, #tpu.memory_space<vmem>>, vector<1x1x8xf32>
    %21 = vector.shape_cast %20 : vector<1x1x8xf32> to vector<8xf32>
    %22 = vector.shape_cast %18 : vector<8xf32> to vector<1x1x8xf32>
    tpu.vector_store %arg3[%c0_6, %19, %c0_7], %22 {strides = array<i32>} : memref<1x1x8xf32, #tpu.memory_space<vmem>>, vector<1x1x8xf32>,
    %c1_i32 = arith.constant 1 : i32
    return
  }
  func.func @transform_0(%arg0: i32) -> (i32, i32) {
    %c0_i32 = arith.constant 0 : i32
    %c0_i32_0 = arith.constant 0 : i32
    return %arg0, %c0_i32 : i32, i32
  }
  func.func @transform_1(%arg0: i32) -> (i32, i32) {
    %c0_i32 = arith.constant 0 : i32
    %c0_i32_0 = arith.constant 0 : i32
    %c0_i32_1 = arith.constant 0 : i32
    return %c0_i32, %c0_i32_0 : i32, i32
  }
  func.func @transform_2(%arg0: i32) -> (i32, i32, i32) {
    %c0_i32 = arith.constant 0 : i32
    %c0_i32_0 = arith.constant 0 : i32
    %c0_i32_1 = arith.constant 0 : i32
    return %arg0, %c0_i32, %c0_i32_0 : i32, i32, i32
  }
}

</mosaic_0001>

<llo_original>
// kernel: tpu_custom_call.1
$region0: #{tpu_custom_call.1}
  #allocation0 [shape = 'u32[]', space=smem, size = 0x4, offset = 0x4, fixed_abs, tag = 'smem constant byte address 0x4 - core index']
  #allocation1 [shape = 'u32[144,128]{1,0:T(1,128)}', space=vmem, size = 0x12000, scoped, tag = 'internal scratch']
  %s0 = inlined_call_operand.vmem [shape: f32[8,128], index: 0, kind: input, shape index: {}]
  %s1 = inlined_call_operand.vmem [shape: bf16[128,32], index: 1, kind: input, shape index: {}]
  %s2 = inlined_call_operand.hbm [shape: f32[1,1,8], index: 2, kind: output, shape index: {}]
  %s3 = sld [smem:[#allocation0]]
  $region18: #{tpu_custom_call.1} parent=0
    _
  %s5 = ssub.s32 1, %s3
  %s6 = scalar_select 0, %s5, %s3
  $region1: #{tpu_custom_call.1} parent=0
    #allocation2 [shape = 'u8[512]{0}', space=vmem, size = 0x400, scoped, tag = 'output window, operand 0, single buffered']
    #allocation3 [shape = 's32[1]{0}', space=sflag, size = 0x4, scoped, tag = 'scoped memory for tpu_custom_call.1']
    %7 = vsyncpa [#allocation3], 0
    // Predicated region
    $region2: #{tpu_custom_call.1} parent=1 // pred_check
      _
    $region3: #{tpu_custom_call.1} parent=1 // pred_check_branch
      %9 = sbr.rel (0) target = $region5
    $region4: #{tpu_custom_call.1} parent=1 // pred_region
      _
    $region5: #{tpu_custom_call.1} parent=1 // pred_fallthru
      _
    // Predicated region
    $region6: #{tpu_custom_call.1} parent=1 // pred_check
      _
    $region7: #{tpu_custom_call.1} parent=1 // pred_check_branch
      %11 = sbr.rel (0) target = $region9
    $region8: #{tpu_custom_call.1} parent=1 // pred_region
      _
    $region9: #{tpu_custom_call.1} parent=1 // pred_fallthru
      _
    %v13 = vld [vmem:[%s1] sm:$0xf]
    %v14 = vld [vmem:[%s1 + $0x4] sm:$0xf]
    %v15 = vld [vmem:[%s1 + $0x8] sm:$0xf]
    %v16 = vld [vmem:[%s1 + $0xc] sm:$0xf]
    %v17 = vld [vmem:[%s1 + $0x10] sm:$0xf]
    %v18 = vld [vmem:[%s1 + $0x14] sm:$0xf]
    %v19 = vld [vmem:[%s1 + $0x18] sm:$0xf]
    %v20 = vld [vmem:[%s1 + $0x1c] sm:$0xf]
    %v21 = vld [vmem:[%s1 + $0x20] sm:$0xf]
    %v22 = vld [vmem:[%s1 + $0x24] sm:$0xf]
    %v23 = vld [vmem:[%s1 + $0x28] sm:$0xf]
    %v24 = vld [vmem:[%s1 + $0x2c] sm:$0xf]
    %v25 = vld [vmem:[%s1 + $0x30] sm:$0xf]
    %v26 = vld [vmem:[%s1 + $0x34] sm:$0xf]
    %v27 = vld [vmem:[%s1 + $0x38] sm:$0xf]
    %v28 = vld [vmem:[%s1 + $0x3c] sm:$0xf]
    %v29 = vld [vmem:[%s0] sm:$0xff]
    %v30 = vpack.c.bf16 %v29, %v29
    %v31 = vunpack.c.l.bf16 %v30
    %v32 = vsub.f32 %v29, %v31
    %v33 = vpack.c.bf16 %v32, %v32
    %v50 = vunpack.c.l.b16 %v13
    %v51 = vunpack.c.l.b16 %v14
    %v52 = vunpack.c.l.b16 %v15
    %v53 = vunpack.c.l.b16 %v16
    %v54 = vunpack.c.l.b16 %v17
    %v55 = vunpack.c.l.b16 %v18
    %v56 = vunpack.c.l.b16 %v19
    %v57 = vunpack.c.l.b16 %v20
    %v58 = vunpack.c.l.b16 %v21
    %v59 = vunpack.c.l.b16 %v22
    %v60 = vunpack.c.l.b16 %v23
    %v61 = vunpack.c.l.b16 %v24
    %v62 = vunpack.c.l.b16 %v25
    %v63 = vunpack.c.l.b16 %v26
    %v64 = vunpack.c.l.b16 %v27
    %v65 = vunpack.c.l.b16 %v28
    %v66 = vpack.c.b16 %v51, %v50
    %v67 = vpack.c.b16 %v53, %v52
    %v68 = vpack.c.b16 %v55, %v54
    %v69 = vpack.c.b16 %v57, %v56
    %v70 = vpack.c.b16 %v59, %v58
    %v71 = vpack.c.b16 %v61, %v60
    %v72 = vpack.c.b16 %v63, %v62
    %v73 = vpack.c.b16 %v65, %v64
    %82 = vmatprep.subr.bf16.mxu0 0
    %83 = vmatpush1.bf16.msra.mxu0 %v73
    %84 = vmatprep.subr.bf16.mxu0 0
    %85 = vmatpush1.bf16.msra.mxu0 %v72
    %86 = vmatprep.subr.bf16.mxu0 0
    %87 = vmatpush1.bf16.msra.mxu0 %v71
    %88 = vmatprep.subr.bf16.mxu0 0
    %89 = vmatpush1.bf16.msra.mxu0 %v70
    %90 = vmatprep.subr.bf16.mxu0 0
    %91 = vmatpush1.bf16.msra.mxu0 %v69
    %92 = vmatprep.subr.bf16.mxu0 0
    %93 = vmatpush1.bf16.msra.mxu0 %v68
    %94 = vmatprep.subr.bf16.mxu0 0
    %95 = vmatpush1.bf16.msra.mxu0 %v67
    %96 = vmatprep.subr.bf16.mxu0 0
    %97 = vmatpush1.bf16.msra.mxu0 %v66
    %98 = vmatprep.subr.bf16.mxu0 0
    %99 = vmatpush2.bf16.msra.mxu0 0
    %100 = vmatprep.subr.bf16.mxu0 0
    %101 = vmatpush2.bf16.msra.mxu0 0
    %102 = vmatprep.subr.bf16.mxu0 0
    %103 = vmatpush2.bf16.msra.mxu0 0
    %104 = vmatprep.subr.bf16.mxu0 0
    %105 = vmatpush2.bf16.msra.mxu0 0
    %106 = vmatprep.subr.bf16.mxu0 0
    %107 = vmatpush2.bf16.msra.mxu0 0
    %108 = vmatprep.subr.bf16.mxu0 0
    %109 = vmatpush2.bf16.msra.mxu0 0
    %110 = vmatprep.subr.bf16.mxu0 0
    %111 = vmatpush2.bf16.msra.mxu0 0
    %112 = vmatprep.subr.bf16.mxu0 0
    %113 = vmatpush2.bf16.msra.mxu0 0
    %114 = vmatprep.mubr.bf16.mxu0 0
    %115 = vmatmul.mubr.bf16.gmra.mxu0 %v33
    %v116 = vpop.f32.mrf.mxu0
    %v117 = vadd.f32 0.0, %v116
    %v118 = vpop.f32.mrf.mxu0
    %v119 = vpop.f32.mrf.mxu0
    %v120 = vpop.f32.mrf.mxu0
    %121 = vdwg.mxu0
    %122 = vmatprep.subr.bf16.mxu0 0
    %123 = vmatpush1.bf16.msra.mxu0 %v73
    %124 = vmatprep.subr.bf16.mxu0 0
    %125 = vmatpush1.bf16.msra.mxu0 %v72
    %126 = vmatprep.subr.bf16.mxu0 0
    %127 = vmatpush1.bf16.msra.mxu0 %v71
    %128 = vmatprep.subr.bf16.mxu0 0
    %129 = vmatpush1.bf16.msra.mxu0 %v70
    %130 = vmatprep.subr.bf16.mxu0 0
    %131 = vmatpush1.bf16.msra.mxu0 %v69
    %132 = vmatprep.subr.bf16.mxu0 0
    %133 = vmatpush1.bf16.msra.mxu0 %v68
    %134 = vmatprep.subr.bf16.mxu0 0
    %135 = vmatpush1.bf16.msra.mxu0 %v67
    %136 = vmatprep.subr.bf16.mxu0 0
    %137 = vmatpush1.bf16.msra.mxu0 %v66
    %138 = vmatprep.subr.bf16.mxu0 0
    %139 = vmatpush2.bf16.msra.mxu0 0
    %140 = vmatprep.subr.bf16.mxu0 0
    %141 = vmatpush2.bf16.msra.mxu0 0
    %142 = vmatprep.subr.bf16.mxu0 0
    %143 = vmatpush2.bf16.msra.mxu0 0
    %144 = vmatprep.subr.bf16.mxu0 0
    %145 = vmatpush2.bf16.msra.mxu0 0
    %146 = vmatprep.subr.bf16.mxu0 0
    %147 = vmatpush2.bf16.msra.mxu0 0
    %148 = vmatprep.subr.bf16.mxu0 0
    %149 = vmatpush2.bf16.msra.mxu0 0
    %150 = vmatprep.subr.bf16.mxu0 0
    %151 = vmatpush2.bf16.msra.mxu0 0
    %152 = vmatprep.subr.bf16.mxu0 0
    %153 = vmatpush2.bf16.msra.mxu0 0
    %154 = vmatprep.mubr.bf16.mxu0 0
    %155 = vmatmul.mubr.bf16.gmra.mxu0 %v30
    %v156 = vpop.f32.mrf.mxu0
    %v157 = vadd.f32 %v117, %v156
    %v158 = vpop.f32.mrf.mxu0
    %v159 = vpop.f32.mrf.mxu0
    %v160 = vpop.f32.mrf.mxu0
    %161 = vdwg.mxu0
    %v162 = vmul.f32 %v157, %v157
    %vm163 = vcmask 261120
    %v164 = vsel %vm163, %v162, 0.0
    %165 = vadd.xlane.f32.xlu0 %v164
    %v166 = vpop.xlane.xlu0 %165
    %v167 = vmul.f32 %v29, %v29
    %168 = vadd.xlane.f32.xlu0 %v167
    %v169 = vpop.xlane.xlu0 %168
    %v170 = vsub.f32 %v166, %v169
    %v171 = vmul.f32 %v170, 0.5
    %v173 = vlaneseq
    %v174 = vand.u32 %v173, 127
    %v175 = vlaneseq
    %v176 = vshrl.u32 %v175, 7
    %v177 = vsub.s32 %v174, %v176
    %v178 = vrot.slane %v171, %v177
    %vm180 = vcmask 57344
    %181 = vst.msk [vmem:[#allocation2] sm:$0x1] %vm180, %v178
    // Predicated region
    $region10: #{tpu_custom_call.1} parent=1 // pred_check
      _
    $region11: #{tpu_custom_call.1} parent=1 // pred_check_branch
      %183 = sbr.rel (0) target = $region13
    $region12: #{tpu_custom_call.1} parent=1 // pred_region
      %s185 = ssub.s32 16, 16
      %186 = vsyncadd [#allocation3], %s185
      %s188 = sshll.u32 [#allocation2], 4
      %s189 = int_to_ptr.vmem [resolvable:$true] %s188
      %191 = dma.vmem_to_hbm [thread:$0]  %s189, 16, %s2, [#allocation3]
    $region13: #{tpu_custom_call.1} parent=1 // pred_fallthru
      _
    // Predicated region
    $region14: #{tpu_custom_call.1} parent=1 // pred_check
      _
    $region15: #{tpu_custom_call.1} parent=1 // pred_check_branch
      %193 = sbr.rel (0) target = $region17
    $region16: #{tpu_custom_call.1} parent=1 // pred_region
      %194 = dma.done [#allocation3], 16
    $region17: #{tpu_custom_call.1} parent=1 // pred_fallthru
      _
    %195 = vsyncpa [#allocation3], 1

</llo_original>
